<compile_context>
chip_gen: v7x
topology: tpu7x:2x2x1
jax: 0.10.0
libtpu: 0.0.40
codegen_flags: <defaults>
</compile_context>

<pallas_src>
import jax
import jax.numpy as jnp
from jax.experimental import pallas as pl
from jax.experimental.pallas import tpu as pltpu

_LANES = 128        # vreg lane width
_ROW_TILE = 2048    # fallback copy: 2048 x 128 f32 = 1 MiB per block


# --------------------------------------------------------------------------
# Primary path: zero-copy identity (no DMA, no compute).
# --------------------------------------------------------------------------
def _identity_alias_kernel(x_hbm_ref, o_hbm_ref):
    # Output is aliased onto the input buffer (input_output_aliases={0: 0});
    # leaving both HBM refs untouched *is* the identity.  No HBM<->VMEM DMA
    # is emitted.  has_side_effects=True keeps the call from being dropped.
    del x_hbm_ref, o_hbm_ref


def _identity_zero_copy(x):
    return pl.pallas_call(
        _identity_alias_kernel,
        out_shape=jax.ShapeDtypeStruct(x.shape, x.dtype),
        in_specs=[pl.BlockSpec(memory_space=pl.ANY)],
        out_specs=pl.BlockSpec(memory_space=pl.ANY),
        input_output_aliases={0: 0},
        compiler_params=pltpu.CompilerParams(has_side_effects=True),
    )(x)


# --------------------------------------------------------------------------
# Fallback path: lane-dense tiled VMEM copy (materialized identity).
# --------------------------------------------------------------------------
def _identity_copy_kernel(x_ref, o_ref):
    o_ref[...] = x_ref[...]


def _identity_tiled_copy(x, row_tile=_ROW_TILE):
    orig_shape = x.shape
    total = x.size

    # Lane-dense view: flatten to [rows, 128] so every store is a full-width vst.
    rows = pl.cdiv(total, _LANES)
    padded_total = rows * _LANES
    flat = x.reshape(-1)
    if padded_total != total:               # pad only to a 128-lane multiple
        flat = jnp.pad(flat, (0, padded_total - total))
    x2d = flat.reshape(rows, _LANES)

    if rows <= row_tile:
        tile_rows = rows                    # full-extent block: always legal
    else:
        tile_rows = row_tile                # multiple of 8; partial last block masked

    grid = (pl.cdiv(rows, tile_rows),)
    spec = pl.BlockSpec((tile_rows, _LANES), lambda i: (i, 0))

    tile_bytes = tile_rows * _LANES * x2d.dtype.itemsize
    vmem_limit = 4 * tile_bytes + (1 << 20)  # double-buffered in+out + headroom

    out2d = pl.pallas_call(
        _identity_copy_kernel,
        out_shape=jax.ShapeDtypeStruct(x2d.shape, x2d.dtype),
        grid=grid,
        in_specs=[spec],
        out_specs=spec,
        input_output_aliases={0: 0},
        compiler_params=pltpu.CompilerParams(
            dimension_semantics=("parallel",),
            vmem_limit_bytes=vmem_limit,
        ),
    )(x2d)

    out_flat = out2d.reshape(-1)
    if padded_total != total:
        out_flat = out_flat[:total]
    return out_flat.reshape(orig_shape)


# --------------------------------------------------------------------------
# Module forward
# --------------------------------------------------------------------------
def random_forest_wrapper_forward(x, *, training=True):
    """Forward pass of RandomForestWrapper.

    training=True  -> identity (zero-copy aliased Pallas call; tiled-copy fallback).
    training=False -> sklearn RandomForestClassifier.predict_proba (not translatable).
    """
    if not training:
        # TODO(synk): eval-mode forward is a fitted sklearn
        # RandomForestClassifier.predict_proba (host-side, data-dependent tree
        # ensemble); no clean Pallas equivalent without pre-extracting the forest
        # into dense (feature_idx, threshold, children, leaf_proba) arrays.
        raise NotImplementedError(
            "eval-mode forward requires a fitted sklearn RandomForestClassifier")

    try:
        out = _identity_zero_copy(x)
        return jax.block_until_ready(out)   # surface any lowering/runtime issue here
    except Exception:
        # Conservative fallback: materialized lane-dense copy with big tiles.
        return _identity_tiled_copy(x)


if __name__ == "__main__":
    key = jax.random.PRNGKey(0)
    # Shapes implied by RandomForestWrapper(input_size): (n_samples, input_size).
    N, INPUT_SIZE = 8, 32
    x = jax.random.normal(key, (N, INPUT_SIZE), dtype=jnp.float32)
    x_host = jax.device_get(x)              # reference copy (alias/donation-safe)

    out = random_forest_wrapper_forward(x, training=True)
    out = jax.block_until_ready(out)

    assert out.shape == x_host.shape and out.dtype == jnp.float32
    assert bool(jnp.allclose(out, jnp.asarray(x_host))), "identity forward mismatch"
    print("KERNEL_OK")
</pallas_src>

<mosaic_0001>
module attributes {stable_mosaic.version = 11 : i64} {
  func.func @_identity_alias_kernel(%arg0: memref<8x32xf32, #tpu.memory_space<any>>, %arg1: memref<8x32xf32, #tpu.memory_space<any>>) attributes {dimension_semantics = [], scalar_prefetch = 0 : i64, scratch_operands = 0 : i64, tpu.core_type = #tpu.core_type<tc>} {
    return
  }
}

module attributes {stable_mosaic.version = 11 : i64} {
  func.func @_identity_copy_kernel(%arg0: i32, %arg1: memref<2x128xf32, #tpu.memory_space<vmem>>, %arg2: memref<2x128xf32, #tpu.memory_space<vmem>>) attributes {dimension_semantics = [#tpu.dimension_semantics<parallel>], iteration_bounds = array<i64: 1>, scalar_prefetch = 0 : i64, scratch_operands = 0 : i64, tpu.core_type = #tpu.core_type<tc>, window_params = [{transform_indices = @transform_0, window_bounds = array<i64: 2, 128>}, {transform_indices = @transform_1, window_bounds = array<i64: 2, 128>}]} {
    %c0 = arith.constant 0 : index
    %c0_0 = arith.constant 0 : index
    %0 = vector.load %arg1[%c0, %c0_0] : memref<2x128xf32, #tpu.memory_space<vmem>>, vector<2x128xf32>
    %c0_1 = arith.constant 0 : index
    %c0_2 = arith.constant 0 : index
    %1 = vector.load %arg2[%c0_1, %c0_2] : memref<2x128xf32, #tpu.memory_space<vmem>>, vector<2x128xf32>
    tpu.vector_store %arg2[%c0_1, %c0_2], %0 {strides = array<i32>} : memref<2x128xf32, #tpu.memory_space<vmem>>, vector<2x128xf32>,
    return
  }
  func.func @transform_0(%arg0: i32) -> (i32, i32) {
    %c0_i32 = arith.constant 0 : i32
    %c0_i32_0 = arith.constant 0 : i32
    return %arg0, %c0_i32 : i32, i32
  }
  func.func @transform_1(%arg0: i32) -> (i32, i32) {
    %c0_i32 = arith.constant 0 : i32
    %c0_i32_0 = arith.constant 0 : i32
    return %arg0, %c0_i32 : i32, i32
  }
}

</mosaic_0001>

<llo_original>
// kernel: tpu_custom_call.1
$region0: #{tpu_custom_call.1}
  #allocation0 [shape = 'u32[]', space=smem, size = 0x4, offset = 0x4, fixed_abs, tag = 'smem constant byte address 0x4 - core index']
  #allocation1 [shape = 'u32[144,128]{1,0:T(1,128)}', space=vmem, size = 0x12000, scoped, tag = 'internal scratch']
  %s0 = inlined_call_operand.hbm [shape: f32[8,32], index: 0, kind: input, shape index: {}, may-alias: {0,1}]
  %s1 = inlined_call_operand.hbm [shape: f32[8,32], index: 1, kind: output, shape index: {}, may-alias: {0,1}]
  %s2 = sld [smem:[#allocation0]]
  $region2: #{tpu_custom_call.1} parent=0
    _
  %s4 = ssub.s32 1, %s2
  %s5 = scalar_select 0, %s4, %s2

// kernel: tpu_custom_call.1
$region0: #{tpu_custom_call.1}
  #allocation0 [shape = 'u32[]', space=smem, size = 0x4, offset = 0x4, fixed_abs, tag = 'smem constant byte address 0x4 - core index']
  #allocation1 [shape = 'u32[144,128]{1,0:T(1,128)}', space=vmem, size = 0x12000, scoped, tag = 'internal scratch']
  %s0 = inlined_call_operand.hbm [shape: f32[2,128], index: 0, kind: input, shape index: {}, may-alias: {0,1}]
  %s1 = inlined_call_operand.hbm [shape: f32[2,128], index: 1, kind: output, shape index: {}, may-alias: {0,1}]
  %s2 = sld [smem:[#allocation0]]
  $region18: #{tpu_custom_call.1} parent=0
    _
  %s4 = ssub.s32 1, %s2
  %s5 = scalar_select 0, %s4, %s2
  $region1: #{tpu_custom_call.1} parent=0
    #allocation2 [shape = 'u8[1024]{0}', space=vmem, size = 0x400, scoped, tag = 'input window, operand 0, single buffered']
    #allocation3 [shape = 's32[1]{0}', space=sflag, size = 0x4, scoped, tag = 'scoped memory for tpu_custom_call.1']
    #allocation4 [shape = 's32[1]{0}', space=sflag, size = 0x4, scoped, tag = 'scoped memory for tpu_custom_call.1']
    #allocation5 [shape = 'u8[1024]{0}', space=vmem, size = 0x400, scoped, tag = 'output window, operand 0, single buffered']
    %6 = vsyncpa [#allocation3], 0
    %7 = vsyncpa [#allocation4], 0
    // Predicated region
    $region2: #{tpu_custom_call.1} parent=1 // pred_check
      _
    $region3: #{tpu_custom_call.1} parent=1 // pred_check_branch
      %9 = sbr.rel (0) target = $region5
    $region4: #{tpu_custom_call.1} parent=1 // pred_region
      %s11 = ssub.s32 32, 32
      %12 = vsyncadd [#allocation3], %s11
      %s14 = sshll.u32 [#allocation2], 4
      %s15 = int_to_ptr.vmem [resolvable:$true] %s14
      %17 = dma.hbm_to_vmem [thread:$0]  %s0, 32, %s15, [#allocation3]
    $region5: #{tpu_custom_call.1} parent=1 // pred_fallthru
      _
    // Predicated region
    $region6: #{tpu_custom_call.1} parent=1 // pred_check
      _
    $region7: #{tpu_custom_call.1} parent=1 // pred_check_branch
      %19 = sbr.rel (0) target = $region9
    $region8: #{tpu_custom_call.1} parent=1 // pred_region
      %20 = dma.done [#allocation3], 32
    $region9: #{tpu_custom_call.1} parent=1 // pred_fallthru
      _
    %v21 = vld [vmem:[#allocation2] sm:$0x3]
    %22 = vst [vmem:[#allocation5] sm:$0x3] %v21
    // Predicated region
    $region10: #{tpu_custom_call.1} parent=1 // pred_check
      _
    $region11: #{tpu_custom_call.1} parent=1 // pred_check_branch
      %24 = sbr.rel (0) target = $region13
    $region12: #{tpu_custom_call.1} parent=1 // pred_region
      %s26 = ssub.s32 32, 32
      %27 = vsyncadd [#allocation4], %s26
      %s29 = sshll.u32 [#allocation5], 4
      %s30 = int_to_ptr.vmem [resolvable:$true] %s29
      %32 = dma.vmem_to_hbm [thread:$0]  %s30, 32, %s1, [#allocation4]
    $region13: #{tpu_custom_call.1} parent=1 // pred_fallthru
      _
    // Predicated region
    $region14: #{tpu_custom_call.1} parent=1 // pred_check
      _
    $region15: #{tpu_custom_call.1} parent=1 // pred_check_branch
      %34 = sbr.rel (0) target = $region17
    $region16: #{tpu_custom_call.1} parent=1 // pred_region
      %35 = dma.done [#allocation4], 32
    $region17: #{tpu_custom_call.1} parent=1 // pred_fallthru
      _
    %36 = vsyncpa [#allocation3], 1
    %37 = vsyncpa [#allocation4], 1

</llo_original>
